<compile_context>
chip_gen: v7x
topology: tpu7x:2x2x1
jax: 0.10.0
libtpu: 0.0.40
codegen_flags: <defaults>
</compile_context>

<pallas_src>
import math

import jax
import jax.numpy as jnp
import numpy as np
from jax.experimental import pallas as pl
from jax.experimental.pallas import tpu as pltpu

# Large finite sentinel for non-candidates (sorts last, cannot create NaN/-inf).
_NEG_SENTINEL = float(np.finfo(np.float32).min)


def _cdiv(a, b):
    return -(-a // b)


def _make_ohem_kernel(TR, CH, r8, need_row_mask):
    """Per-tile kernel: TR rows per block, processed in CH-row chunks by a
    fori_loop carrying four (8,128) f32 accumulators."""
    n_chunks = TR // CH

    def kernel(pred_ref, gt_ref, ign_ref, w_ref, neg_ref, stats_ref):
        row0 = pl.program_id(1) * TR  # global row offset of this tile

        def lane_partial(x):
            # (CH,128) -> (8,128): tile-aligned reshape + leading-axis sum =
            # pure vreg-wise VPU adds (single cross-lane reduce happens once
            # in the glue, not per chunk).
            return jnp.sum(x.reshape(CH // 8, 8, 128), axis=0)

        def chunk_body(c, carry):
            acc_pl, acc_pc, acc_ig, acc_nc = carry
            start = c * CH
            if not isinstance(start, int):
                start = pl.multiple_of(start, CH)
            rows = pl.ds(start, CH)

            pred = pred_ref[0, rows, :]
            gt = gt_ref[0, rows, :]
            ign = ign_ref[0, rows, :]
            w = w_ref[0, rows, :]

            if need_row_mask:
                # Rows >= r8 only exist in the partial last block; their
                # contents are undefined, so zero them BEFORE any arithmetic
                # (no NaN/Inf, no spurious positives / negative candidates).
                grow = row0 + start + jax.lax.broadcasted_iota(
                    jnp.int32, (CH, 128), 0)
                valid = grow < r8
                pred = jnp.where(valid, pred, 0.0)
                gt = jnp.where(valid, gt, 0.0)
                ign = jnp.where(valid, ign, 0.0)
                w = jnp.where(valid, w, 0.0)

            # SmoothL1 (beta=1, reduction='none'), weighted.
            diff = pred - gt
            absd = jnp.abs(diff)
            sl1 = jnp.where(absd < 1.0, 0.5 * diff * diff, absd - 0.5)
            sample_loss = sl1 * w

            pos = (gt > 0.0).astype(jnp.float32)
            is_neg = jnp.logical_and(gt == 0.0, ign != 0.0)

            # Negative candidates keep their loss; everything else gets the
            # large finite negative sentinel (sorts last, never poisons top-k).
            neg_ref[0, rows, :] = jnp.where(is_neg, sample_loss, _NEG_SENTINEL)

            return (acc_pl + lane_partial(sample_loss * pos),
                    acc_pc + lane_partial(pos),
                    acc_ig + lane_partial(ign),
                    acc_nc + lane_partial(is_neg.astype(jnp.float32)))

        zeros = jnp.zeros((8, 128), jnp.float32)
        init = (zeros, zeros, zeros, zeros)
        if n_chunks == 1:
            acc_pl, acc_pc, acc_ig, acc_nc = chunk_body(0, init)
        else:
            acc_pl, acc_pc, acc_ig, acc_nc = jax.lax.fori_loop(
                0, n_chunks, chunk_body, init, unroll=min(2, n_chunks))

        # Four aligned (8,128) sub-stores (no concat / sublane relayout).
        stats_ref[0, 0, 0:8, :] = acc_pl     # positive loss sum
        stats_ref[0, 0, 8:16, :] = acc_pc    # positive count
        stats_ref[0, 0, 16:24, :] = acc_ig   # sum(ignore_mask)
        stats_ref[0, 0, 24:32, :] = acc_nc   # negative-candidate count

    return kernel


def smooth_ohem_loss(preds_imgs, gt_imgs, ignore_masks, gt_weights):
    """JAX/Pallas equivalent of SmoothOhemLoss.forward (returns a scalar)."""
    B = preds_imgs.shape[0]
    N = int(math.prod(preds_imgs.shape[1:]))

    # Lane-dense layout: r8 rows of 128 lanes (r8 = ceil(N/128) rounded to 8).
    r8 = _cdiv(_cdiv(N, 128), 8) * 8
    Npad = r8 * 128  # == round_up(N, 1024)

    # ---------------- row-tile sizing ----------------
    TR_TARGET = 2048                      # ~1 MiB per f32 stream per block
    nt = max(1, _cdiv(r8, TR_TARGET))
    # v7x shards the "parallel" grid axes across 2 TensorCores; make sure
    # there are a few grid steps so both cores get balanced work and the
    # pipeline has >= 2 steps per core (also helps pipelining on v5e/v6e).
    while B * nt < 4 and nt * 8 < r8:
        nt += 1
    tpt = _cdiv(_cdiv(r8, nt), 8) * 8     # ideal rows/tile (multiple of 8)
    TR = None
    for cand in range(tpt, min(2 * tpt, 2048, r8) + 1, 8):
        if r8 % cand == 0:                # exact division: no partial block
            TR = cand
            break
    if TR is None:                        # awkward r8: partial last block,
        TR = min(_cdiv(tpt, 64) * 64, r8)  # masked inside the kernel
    num_tiles = _cdiv(r8, TR)
    need_row_mask = (num_tiles * TR != r8)
    R_out = num_tiles * TR                # neg slab rows (tail rows, if any,
                                          # only ever hold the sentinel)

    # Chunk rows inside a tile (bounds vreg live ranges; pure VPU adds).
    CH = 8
    for c in (64, 56, 48, 40, 32, 24, 16, 8):
        if TR % c == 0:
            CH = c
            break

    def prep(x):
        flat = jnp.asarray(x, jnp.float32).reshape(B, N)
        if Npad > N:
            # Minimal tail pad, only when N % 1024 != 0 (zero padding is
            # neither positive nor a negative candidate and adds 0 to stats).
            flat = jnp.pad(flat, ((0, 0), (0, Npad - N)))
        return flat.reshape(B, r8, 128)

    in_spec = pl.BlockSpec((1, TR, 128), lambda b, t: (b, t, 0))
    neg_spec = pl.BlockSpec((1, TR, 128), lambda b, t: (b, t, 0))
    stats_spec = pl.BlockSpec((1, 1, 32, 128), lambda b, t: (b, t, 0, 0))

    bytes_accessed = (4 * B * Npad + B * R_out * 128
                      + B * num_tiles * 32 * 128) * 4
    cost = pl.CostEstimate(flops=12 * B * Npad, transcendentals=0,
                           bytes_accessed=bytes_accessed)

    kernel = _make_ohem_kernel(TR, CH, r8, need_row_mask)

    neg, stats = pl.pallas_call(
        kernel,
        out_shape=(
            jax.ShapeDtypeStruct((B, R_out, 128), jnp.float32),
            jax.ShapeDtypeStruct((B, num_tiles, 32, 128), jnp.float32),
        ),
        grid_spec=pl.GridSpec(
            grid=(B, num_tiles),
            in_specs=[in_spec, in_spec, in_spec, in_spec],
            out_specs=(neg_spec, stats_spec),
        ),
        compiler_params=pltpu.CompilerParams(
            dimension_semantics=("parallel", "parallel")),
        cost_estimate=cost,
    )(prep(preds_imgs), prep(gt_imgs), prep(ignore_masks), prep(gt_weights))

    # ----- tiny cross-tile / cross-lane reduction of the per-tile partials -----
    stats = stats.reshape(B, num_tiles, 4, 8, 128)
    pos_sum = jnp.sum(stats[:, :, 0], axis=(1, 2, 3))
    # Count partials are exact small integers in f32; reduce them in int32 so
    # pos/neg counts (and hence k) stay exact for arbitrarily large N.
    pos_cnt = jnp.sum(stats[:, :, 1].astype(jnp.int32), axis=(1, 2, 3))
    num_all = jnp.sum(stats[:, :, 2], axis=(1, 2, 3))
    neg_cnt = jnp.sum(stats[:, :, 3].astype(jnp.int32), axis=(1, 2, 3))
    pos_cnt_f = pos_cnt.astype(jnp.float32)
    neg_cnt_f = neg_cnt.astype(jnp.float32)

    # Dynamic-k OHEM: k = min(3*num_pos, floor(num_all - num_pos)) if pos > 0
    # else 500, clamped to the number of real negative candidates.
    k_pos = jnp.minimum(3.0 * pos_cnt_f, jnp.floor(num_all - pos_cnt_f))
    k = jnp.where(pos_cnt_f > 0, k_pos, 500.0)
    k = jnp.clip(k, 0.0, neg_cnt_f)

    # TODO(synk): the data-dependent (per-sample dynamic k) top-k selection has
    # no clean Pallas equivalent; it stays in XLA glue via bounded lax.top_k.
    Nflat = R_out * 128
    neg_flat = neg.reshape(B, Nflat)
    K_CAP = int(min(Nflat, 2048))

    # Hierarchical bounded top-k for large N: per-chunk top-K_CAP, then a final
    # top-K_CAP over the (num_chunks * K_CAP) candidates.  The global top-k is
    # always a subset of the per-chunk top-k, so the result is identical.
    chunk = Nflat
    if Nflat > 128 * 1024:
        units = Nflat // 1024
        for d in range(min(64, units), 0, -1):
            if units % d == 0:
                chunk = d * 1024
                break
    use_hier = (chunk < Nflat) and (chunk >= 2 * K_CAP) and (Nflat // chunk >= 4)

    def _topk_bounded(nf):
        if use_hier:
            per = jax.lax.top_k(nf.reshape(B, Nflat // chunk, chunk), K_CAP)[0]
            vals = jax.lax.top_k(per.reshape(B, (Nflat // chunk) * K_CAP),
                                 K_CAP)[0]
        else:
            vals = jax.lax.top_k(nf, K_CAP)[0]
        idx = jnp.arange(K_CAP, dtype=jnp.float32)[None, :]
        return jnp.sum(jnp.where(idx < k[:, None], vals, 0.0), axis=1)

    def _topk_full(nf):
        # Rare huge-k fallback: ascending sort, sum the LAST k entries
        # (no [:, ::-1] reversal copy).
        s = jnp.sort(nf, axis=1)
        idx = jnp.arange(Nflat, dtype=jnp.float32)[None, :]
        return jnp.sum(jnp.where(idx >= (Nflat - k[:, None]), s, 0.0), axis=1)

    if K_CAP >= Nflat:
        topk_sum = _topk_bounded(neg_flat)
    else:
        topk_sum = jax.lax.cond(jnp.max(k) <= float(K_CAP),
                                _topk_bounded, _topk_full, neg_flat)

    topk_mean = topk_sum / jnp.maximum(k, 1.0)
    pos_mean = pos_sum / jnp.maximum(pos_cnt_f, 1.0)
    # NOTE: a sample with zero negative candidates contributes 0 for the
    # negative term instead of the reference's NaN / torch.topk error.
    per_sample = jnp.where(pos_cnt_f > 0, pos_mean + topk_mean, topk_mean)
    return jnp.mean(per_sample)


def _reference_numpy(preds, gts, igns, ws):
    """Pure numpy re-implementation of the PyTorch forward for verification."""
    B = preds.shape[0]
    losses = []
    for i in range(B):
        pred = preds[i].reshape(-1)
        gt = gts[i].reshape(-1)
        ign = igns[i].reshape(-1)
        w = ws[i].reshape(-1)
        diff = pred - gt
        absd = np.abs(diff)
        sl1 = np.where(absd < 1.0, 0.5 * diff * diff, absd - 0.5) * w
        pos = gt > 0
        neg = (gt == 0) & (ign != 0)
        pos_loss = sl1[pos]
        neg_loss = np.sort(sl1[neg])[::-1]
        num_pos = int(pos.sum())
        num_all = float(ign.sum())
        if num_pos > 0:
            k = num_pos * 3
            if k + num_pos > num_all:
                k = int(num_all - num_pos)
            losses.append(pos_loss.mean() + neg_loss[:k].mean())
        else:
            losses.append(neg_loss[:500].mean())
    return float(np.mean(losses))


if __name__ == "__main__":
    key = jax.random.PRNGKey(0)
    B, C, H, W = 2, 4, 16, 16
    k1, k2, k3, k4, k5 = jax.random.split(key, 5)

    preds = jax.random.normal(k1, (B, C, H, W), jnp.float32)
    # Sparse positive targets (heatmap-like), zeros elsewhere.
    gate = jax.random.uniform(k2, (B, C, H, W))
    gts = jnp.where(gate > 0.95,
                    jax.random.uniform(k3, (B, C, H, W)) + 0.5,
                    0.0).astype(jnp.float32)
    ignore_masks = (jax.random.uniform(k4, (B, C, H, W)) > 0.2).astype(jnp.float32)
    gt_weights = jax.random.uniform(k5, (B, C, H, W),
                                    minval=0.5, maxval=1.5).astype(jnp.float32)

    loss_fn = jax.jit(smooth_ohem_loss)
    loss = jax.block_until_ready(loss_fn(preds, gts, ignore_masks, gt_weights))

    ref = _reference_numpy(np.asarray(preds), np.asarray(gts),
                           np.asarray(ignore_masks), np.asarray(gt_weights))
    assert np.isfinite(float(loss))
    np.testing.assert_allclose(float(loss), ref, rtol=1e-5, atol=1e-5)

    print("KERNEL_OK")
</pallas_src>

<mosaic_0001>
module attributes {stable_mosaic.version = 11 : i64} {
  func.func @kernel(%arg0: i32, %arg1: i32, %arg2: memref<1x8x128xf32, #tpu.memory_space<vmem>>, %arg3: memref<1x8x128xf32, #tpu.memory_space<vmem>>, %arg4: memref<1x8x128xf32, #tpu.memory_space<vmem>>, %arg5: memref<1x8x128xf32, #tpu.memory_space<vmem>>, %arg6: memref<1x8x128xf32, #tpu.memory_space<vmem>>, %arg7: memref<1x1x32x128xf32, #tpu.memory_space<vmem>>) attributes {dimension_semantics = [#tpu.dimension_semantics<parallel>, #tpu.dimension_semantics<parallel>], iteration_bounds = array<i64: 2, 1>, scalar_prefetch = 0 : i64, scratch_operands = 0 : i64, tpu.core_type = #tpu.core_type<tc>, window_params = [{transform_indices = @transform_0, window_bounds = array<i64: 1, 8, 128>}, {transform_indices = @transform_1, window_bounds = array<i64: 1, 8, 128>}, {transform_indices = @transform_2, window_bounds = array<i64: 1, 8, 128>}, {transform_indices = @transform_3, window_bounds = array<i64: 1, 8, 128>}, {transform_indices = @transform_4, window_bounds = array<i64: 1, 8, 128>}, {transform_indices = @transform_5, window_bounds = array<i64: 1, 1, 32, 128>}]} {
    %cst = arith.constant 0.000000e+00 : f32
    %0 = vector.broadcast %cst : f32 to vector<8x128xf32>
    %c0 = arith.constant 0 : index
    %c0_0 = arith.constant 0 : index
    %c0_1 = arith.constant 0 : index
    %1 = vector.load %arg2[%c0, %c0_0, %c0_1] : memref<1x8x128xf32, #tpu.memory_space<vmem>>, vector<1x8x128xf32>
    %2 = vector.shape_cast %1 : vector<1x8x128xf32> to vector<8x128xf32>
    %c0_2 = arith.constant 0 : index
    %c0_3 = arith.constant 0 : index
    %c0_4 = arith.constant 0 : index
    %3 = vector.load %arg3[%c0_2, %c0_3, %c0_4] : memref<1x8x128xf32, #tpu.memory_space<vmem>>, vector<1x8x128xf32>
    %4 = vector.shape_cast %3 : vector<1x8x128xf32> to vector<8x128xf32>
    %c0_5 = arith.constant 0 : index
    %c0_6 = arith.constant 0 : index
    %c0_7 = arith.constant 0 : index
    %5 = vector.load %arg4[%c0_5, %c0_6, %c0_7] : memref<1x8x128xf32, #tpu.memory_space<vmem>>, vector<1x8x128xf32>
    %6 = vector.shape_cast %5 : vector<1x8x128xf32> to vector<8x128xf32>
    %c0_8 = arith.constant 0 : index
    %c0_9 = arith.constant 0 : index
    %c0_10 = arith.constant 0 : index
    %7 = vector.load %arg5[%c0_8, %c0_9, %c0_10] : memref<1x8x128xf32, #tpu.memory_space<vmem>>, vector<1x8x128xf32>
    %8 = vector.shape_cast %7 : vector<1x8x128xf32> to vector<8x128xf32>
    %9 = arith.subf %2, %4 : vector<8x128xf32>
    %10 = math.absf %9 : vector<8x128xf32>
    %cst_11 = arith.constant 1.000000e+00 : f32
    %11 = vector.broadcast %cst_11 : f32 to vector<8x128xf32>
    %12 = arith.cmpf olt, %10, %11 : vector<8x128xf32>
    %cst_12 = arith.constant 5.000000e-01 : f32
    %13 = vector.broadcast %cst_12 : f32 to vector<8x128xf32>
    %14 = arith.mulf %13, %9 : vector<8x128xf32>
    %15 = arith.mulf %14, %9 : vector<8x128xf32>
    %cst_13 = arith.constant 5.000000e-01 : f32
    %16 = vector.broadcast %cst_13 : f32 to vector<8x128xf32>
    %17 = arith.subf %10, %16 : vector<8x128xf32>
    %18 = arith.select %12, %15, %17 : vector<8x128xi1>, vector<8x128xf32>
    %19 = arith.mulf %18, %8 : vector<8x128xf32>
    %cst_14 = arith.constant 0.000000e+00 : f32
    %20 = vector.broadcast %cst_14 : f32 to vector<8x128xf32>
    %21 = arith.cmpf ogt, %4, %20 : vector<8x128xf32>
    %22 = arith.extui %21 : vector<8x128xi1> to vector<8x128xi32>
    %23 = arith.sitofp %22 : vector<8x128xi32> to vector<8x128xf32>
    %cst_15 = arith.constant 0.000000e+00 : f32
    %24 = vector.broadcast %cst_15 : f32 to vector<8x128xf32>
    %25 = arith.cmpf oeq, %4, %24 : vector<8x128xf32>
    %cst_16 = arith.constant 0.000000e+00 : f32
    %26 = vector.broadcast %cst_16 : f32 to vector<8x128xf32>
    %27 = arith.cmpf one, %6, %26 : vector<8x128xf32>
    %28 = arith.andi %25, %27 : vector<8x128xi1>
    %cst_17 = arith.constant -3.40282347E+38 : f32
    %29 = vector.broadcast %cst_17 : f32 to vector<8x128xf32>
    %30 = arith.select %28, %19, %29 : vector<8x128xi1>, vector<8x128xf32>
    %c0_18 = arith.constant 0 : index
    %c0_19 = arith.constant 0 : index
    %c0_20 = arith.constant 0 : index
    %31 = vector.load %arg6[%c0_18, %c0_19, %c0_20] : memref<1x8x128xf32, #tpu.memory_space<vmem>>, vector<1x8x128xf32>
    %32 = vector.shape_cast %31 : vector<1x8x128xf32> to vector<8x128xf32>
    %33 = vector.shape_cast %30 : vector<8x128xf32> to vector<1x8x128xf32>
    tpu.vector_store %arg6[%c0_18, %c0_19, %c0_20], %33 {strides = array<i32>} : memref<1x8x128xf32, #tpu.memory_space<vmem>>, vector<1x8x128xf32>,
    %34 = arith.mulf %19, %23 : vector<8x128xf32>
    %35 = vector.shape_cast %34 : vector<8x128xf32> to vector<1x8x128xf32>
    %cst_21 = arith.constant dense<0.000000e+00> : vector<8x128xf32>
    %36 = vector.multi_reduction <add>, %35, %cst_21 [0] : vector<1x8x128xf32> to vector<8x128xf32>
    %37 = arith.addf %0, %36 : vector<8x128xf32>
    %38 = vector.shape_cast %23 : vector<8x128xf32> to vector<1x8x128xf32>
    %cst_22 = arith.constant dense<0.000000e+00> : vector<8x128xf32>
    %39 = vector.multi_reduction <add>, %38, %cst_22 [0] : vector<1x8x128xf32> to vector<8x128xf32>
    %40 = arith.addf %0, %39 : vector<8x128xf32>
    %41 = vector.shape_cast %6 : vector<8x128xf32> to vector<1x8x128xf32>
    %cst_23 = arith.constant dense<0.000000e+00> : vector<8x128xf32>
    %42 = vector.multi_reduction <add>, %41, %cst_23 [0] : vector<1x8x128xf32> to vector<8x128xf32>
    %43 = arith.addf %0, %42 : vector<8x128xf32>
    %44 = arith.extui %28 : vector<8x128xi1> to vector<8x128xi32>
    %45 = arith.sitofp %44 : vector<8x128xi32> to vector<8x128xf32>
    %46 = vector.shape_cast %45 : vector<8x128xf32> to vector<1x8x128xf32>
    %cst_24 = arith.constant dense<0.000000e+00> : vector<8x128xf32>
    %47 = vector.multi_reduction <add>, %46, %cst_24 [0] : vector<1x8x128xf32> to vector<8x128xf32>
    %48 = arith.addf %0, %47 : vector<8x128xf32>
    %c0_25 = arith.constant 0 : index
    %c0_26 = arith.constant 0 : index
    %c0_27 = arith.constant 0 : index
    %c0_28 = arith.constant 0 : index
    %49 = vector.load %arg7[%c0_25, %c0_26, %c0_27, %c0_28] : memref<1x1x32x128xf32, #tpu.memory_space<vmem>>, vector<1x1x8x128xf32>
    %50 = vector.shape_cast %49 : vector<1x1x8x128xf32> to vector<8x128xf32>
    %51 = vector.shape_cast %37 : vector<8x128xf32> to vector<1x1x8x128xf32>
    tpu.vector_store %arg7[%c0_25, %c0_26, %c0_27, %c0_28], %51 {strides = array<i32>} : memref<1x1x32x128xf32, #tpu.memory_space<vmem>>, vector<1x1x8x128xf32>,
    %c0_29 = arith.constant 0 : index
    %c0_30 = arith.constant 0 : index
    %c8 = arith.constant 8 : index
    %c0_31 = arith.constant 0 : index
    %52 = vector.load %arg7[%c0_29, %c0_30, %c8, %c0_31] : memref<1x1x32x128xf32, #tpu.memory_space<vmem>>, vector<1x1x8x128xf32>
    %53 = vector.shape_cast %52 : vector<1x1x8x128xf32> to vector<8x128xf32>
    %54 = vector.shape_cast %40 : vector<8x128xf32> to vector<1x1x8x128xf32>
    tpu.vector_store %arg7[%c0_29, %c0_30, %c8, %c0_31], %54 {strides = array<i32>} : memref<1x1x32x128xf32, #tpu.memory_space<vmem>>, vector<1x1x8x128xf32>,
    %c0_32 = arith.constant 0 : index
    %c0_33 = arith.constant 0 : index
    %c16 = arith.constant 16 : index
    %c0_34 = arith.constant 0 : index
    %55 = vector.load %arg7[%c0_32, %c0_33, %c16, %c0_34] : memref<1x1x32x128xf32, #tpu.memory_space<vmem>>, vector<1x1x8x128xf32>
    %56 = vector.shape_cast %55 : vector<1x1x8x128xf32> to vector<8x128xf32>
    %57 = vector.shape_cast %43 : vector<8x128xf32> to vector<1x1x8x128xf32>
    tpu.vector_store %arg7[%c0_32, %c0_33, %c16, %c0_34], %57 {strides = array<i32>} : memref<1x1x32x128xf32, #tpu.memory_space<vmem>>, vector<1x1x8x128xf32>,
    %c0_35 = arith.constant 0 : index
    %c0_36 = arith.constant 0 : index
    %c24 = arith.constant 24 : index
    %c0_37 = arith.constant 0 : index
    %58 = vector.load %arg7[%c0_35, %c0_36, %c24, %c0_37] : memref<1x1x32x128xf32, #tpu.memory_space<vmem>>, vector<1x1x8x128xf32>
    %59 = vector.shape_cast %58 : vector<1x1x8x128xf32> to vector<8x128xf32>
    %60 = vector.shape_cast %48 : vector<8x128xf32> to vector<1x1x8x128xf32>
    tpu.vector_store %arg7[%c0_35, %c0_36, %c24, %c0_37], %60 {strides = array<i32>} : memref<1x1x32x128xf32, #tpu.memory_space<vmem>>, vector<1x1x8x128xf32>,
    return
  }
  func.func @transform_0(%arg0: i32, %arg1: i32) -> (i32, i32, i32) {
    %c0_i32 = arith.constant 0 : i32
    %c0_i32_0 = arith.constant 0 : i32
    return %arg0, %arg1, %c0_i32 : i32, i32, i32
  }
  func.func @transform_1(%arg0: i32, %arg1: i32) -> (i32, i32, i32) {
    %c0_i32 = arith.constant 0 : i32
    %c0_i32_0 = arith.constant 0 : i32
    return %arg0, %arg1, %c0_i32 : i32, i32, i32
  }
  func.func @transform_2(%arg0: i32, %arg1: i32) -> (i32, i32, i32) {
    %c0_i32 = arith.constant 0 : i32
    %c0_i32_0 = arith.constant 0 : i32
    return %arg0, %arg1, %c0_i32 : i32, i32, i32
  }
  func.func @transform_3(%arg0: i32, %arg1: i32) -> (i32, i32, i32) {
    %c0_i32 = arith.constant 0 : i32
    %c0_i32_0 = arith.constant 0 : i32
    return %arg0, %arg1, %c0_i32 : i32, i32, i32
  }
  func.func @transform_4(%arg0: i32, %arg1: i32) -> (i32, i32, i32) {
    %c0_i32 = arith.constant 0 : i32
    %c0_i32_0 = arith.constant 0 : i32
    return %arg0, %arg1, %c0_i32 : i32, i32, i32
  }
  func.func @transform_5(%arg0: i32, %arg1: i32) -> (i32, i32, i32, i32) {
    %c0_i32 = arith.constant 0 : i32
    %c0_i32_0 = arith.constant 0 : i32
    %c0_i32_1 = arith.constant 0 : i32
    return %arg0, %arg1, %c0_i32, %c0_i32_0 : i32, i32, i32, i32
  }
}

</mosaic_0001>

<llo_original>
// kernel: smooth_ohem_loss.1
$region0: #{smooth_ohem_loss.1}
  #allocation0 [shape = 'u32[]', space=smem, size = 0x4, offset = 0x4, fixed_abs, tag = 'smem constant byte address 0x4 - core index']
  #allocation1 [shape = 'u32[144,128]{1,0:T(1,128)}', space=vmem, size = 0x12000, scoped, tag = 'internal scratch']
  %s0 = inlined_call_operand.vmem [shape: f32[2,8,128], index: 0, kind: input, shape index: {}]
  %s1 = inlined_call_operand.vmem [shape: f32[2,8,128], index: 1, kind: input, shape index: {}]
  %s2 = inlined_call_operand.vmem [shape: f32[2,8,128], index: 2, kind: input, shape index: {}]
  %s3 = inlined_call_operand.vmem [shape: f32[2,8,128], index: 3, kind: input, shape index: {}]
  %s4 = inlined_call_operand.vmem [shape: f32[2,8,128], index: 4, kind: output, shape index: {0}]
  %s5 = inlined_call_operand.vmem [shape: f32[2,1,32,128], index: 5, kind: output, shape index: {1}]
  %6 = xla_tuple %s4, %s5
  %s7 = sld [smem:[#allocation0]]
  $region57: #{smooth_ohem_loss.1} parent=0
    _
  %s9 = ssub.s32 1, %s7
  %s10 = scalar_select 0, %s9, %s7
  loop: start=0, step=1, limit=4
  $region2: #{smooth_ohem_loss.1} parent=0 // loop_pre_header
    _
  $region3: #{smooth_ohem_loss.1} parent=0 // loop_header
    %s12 = sphi 0, %s16
    %p13 = scmp.ge.s32.totalorder %s12, 4
    %s19 = sphi 0, %s31
    %s20 = sphi 0, %s27
    %s21 = sphi 0, %s19
    %s22 = sphi 0, %s20
    %s23 = sphi 0, %s21
    %s24 = sphi 0, %s22
    %s36 = sphi 0, %s38
    %s39 = sphi 0, %s36
    %s40 = sphi 0, %s39
    %s56 = sphi 0, %s40
    %s64 = sphi 0, %s66
    %s67 = sphi 0, %s64
    %s68 = sphi 0, %s67
    %s84 = sphi 0, %s68
    %s92 = sphi 0, %s94
    %s95 = sphi 0, %s92
    %s96 = sphi 0, %s95
    %s112 = sphi 0, %s96
    %s120 = sphi 0, %s122
    %s123 = sphi 0, %s120
    %s124 = sphi 0, %s123
    %s140 = sphi 0, %s124
    %s148 = sphi 0, %s150
    %s151 = sphi 0, %s148
    %s152 = sphi 0, %s151
    %s168 = sphi 0, %s152
    %s176 = sphi 0, %s178
    %s179 = sphi 0, %s176
    %s180 = sphi 0, %s179
    %s196 = sphi 0, %s180
  $region4: #{smooth_ohem_loss.1} parent=0 // loop_header_branch
    %15 = sbr.rel (%p13) target = $region8
  $region5: #{smooth_ohem_loss.1} parent=0 // loop_body
    %s17 = ssub.s32 %s12, 1
    %s18 = ssub.s32 %s12, 2
    %s25 = sadd.s32 1, %s20
    %p26 = scmp.ge.s32.totalorder %s25, 1
    %s27 = scalar_select %p26, 0, %s25
    %s28 = sadd.s32 1, %s19
    %s29 = scalar_select %p26, %s28, %s19
    %p30 = scmp.ge.s32.totalorder %s29, 2
    %s31 = scalar_select %p30, 0, %s29
    %s32 = ssub.s32 %s19, %s31
    %s33 = ssub.s32 %s20, %s27
    %s34 = sor.u32 %s32, %s33
    %p35 = scmp.eq.s32.totalorder %s34, 0
    %s37 = sadd.s32 %s36, 1
    %s38 = scalar_select %p35, %s36, %s37
    %p41 = pneg %p35
    %p42 = scmp.eq.s32.totalorder %s12, 1
    %p43 = por %p41, %p42
    %p44 = scmp.ne.s32.totalorder %s36, %s39
    %p45 = scmp.eq.s32.totalorder %s12, 0
    %p46 = por %p44, %p45
    %p47 = scmp.ne.s32.totalorder %s36, %s39
    %p48 = scmp.eq.s32.totalorder %s17, 1
    %p49 = por %p47, %p48
    %p50 = scmp.ne.s32.totalorder %s39, %s40
    %p51 = scmp.eq.s32.totalorder %s17, 0
    %p52 = por %p50, %p51
    %p53 = scmp.ne.s32.totalorder %s39, %s40
    %p54 = scmp.eq.s32.totalorder %s18, 1
    %p55 = por %p53, %p54
    %p57 = scmp.ne.s32.totalorder %s40, %s56
    %p58 = scmp.eq.s32.totalorder %s18, 0
    %p59 = por %p57, %p58
    %s60 = ssub.s32 %s19, %s31
    %s61 = ssub.s32 %s20, %s27
    %s62 = sor.u32 %s60, %s61
    %p63 = scmp.eq.s32.totalorder %s62, 0
    %s65 = sadd.s32 %s64, 1
    %s66 = scalar_select %p63, %s64, %s65
    %p69 = pneg %p63
    %p70 = scmp.eq.s32.totalorder %s12, 1
    %p71 = por %p69, %p70
    %p72 = scmp.ne.s32.totalorder %s64, %s67
    %p73 = scmp.eq.s32.totalorder %s12, 0
    %p74 = por %p72, %p73
    %p75 = scmp.ne.s32.totalorder %s64, %s67
    %p76 = scmp.eq.s32.totalorder %s17, 1
    %p77 = por %p75, %p76
    %p78 = scmp.ne.s32.totalorder %s67, %s68
    %p79 = scmp.eq.s32.totalorder %s17, 0
    %p80 = por %p78, %p79
    %p81 = scmp.ne.s32.totalorder %s67, %s68
    %p82 = scmp.eq.s32.totalorder %s18, 1
    %p83 = por %p81, %p82
    %p85 = scmp.ne.s32.totalorder %s68, %s84
    %p86 = scmp.eq.s32.totalorder %s18, 0
    %p87 = por %p85, %p86
    %s88 = ssub.s32 %s19, %s31
    %s89 = ssub.s32 %s20, %s27
    %s90 = sor.u32 %s88, %s89
    %p91 = scmp.eq.s32.totalorder %s90, 0
    %s93 = sadd.s32 %s92, 1
    %s94 = scalar_select %p91, %s92, %s93
    %p97 = pneg %p91
    %p98 = scmp.eq.s32.totalorder %s12, 1
    %p99 = por %p97, %p98
    %p100 = scmp.ne.s32.totalorder %s92, %s95
    %p101 = scmp.eq.s32.totalorder %s12, 0
    %p102 = por %p100, %p101
    %p103 = scmp.ne.s32.totalorder %s92, %s95
    %p104 = scmp.eq.s32.totalorder %s17, 1
    %p105 = por %p103, %p104
    %p106 = scmp.ne.s32.totalorder %s95, %s96
    %p107 = scmp.eq.s32.totalorder %s17, 0
    %p108 = por %p106, %p107
    %p109 = scmp.ne.s32.totalorder %s95, %s96
    %p110 = scmp.eq.s32.totalorder %s18, 1
    %p111 = por %p109, %p110
    %p113 = scmp.ne.s32.totalorder %s96, %s112
    %p114 = scmp.eq.s32.totalorder %s18, 0
    %p115 = por %p113, %p114
    %s116 = ssub.s32 %s19, %s31
    %s117 = ssub.s32 %s20, %s27
    %s118 = sor.u32 %s116, %s117
    %p119 = scmp.eq.s32.totalorder %s118, 0
    %s121 = sadd.s32 %s120, 1
    %s122 = scalar_select %p119, %s120, %s121
    %p125 = pneg %p119
    %p126 = scmp.eq.s32.totalorder %s12, 1
    %p127 = por %p125, %p126
    %p128 = scmp.ne.s32.totalorder %s120, %s123
    %p129 = scmp.eq.s32.totalorder %s12, 0
    %p130 = por %p128, %p129
    %p131 = scmp.ne.s32.totalorder %s120, %s123
    %p132 = scmp.eq.s32.totalorder %s17, 1
    %p133 = por %p131, %p132
    %p134 = scmp.ne.s32.totalorder %s123, %s124
    %p135 = scmp.eq.s32.totalorder %s17, 0
    %p136 = por %p134, %p135
    %p137 = scmp.ne.s32.totalorder %s123, %s124
    %p138 = scmp.eq.s32.totalorder %s18, 1
    %p139 = por %p137, %p138
    %p141 = scmp.ne.s32.totalorder %s124, %s140
    %p142 = scmp.eq.s32.totalorder %s18, 0
    %p143 = por %p141, %p142
    %s144 = ssub.s32 %s19, %s31
    %s145 = ssub.s32 %s20, %s27
    %s146 = sor.u32 %s144, %s145
    %p147 = scmp.eq.s32.totalorder %s146, 0
    %s149 = sadd.s32 %s148, 1
    %s150 = scalar_select %p147, %s148, %s149
    %p153 = pneg %p147
    %p154 = scmp.eq.s32.totalorder %s12, 1
    %p155 = por %p153, %p154
    %p156 = scmp.ne.s32.totalorder %s148, %s151
    %p157 = scmp.eq.s32.totalorder %s12, 0
    %p158 = por %p156, %p157
    %p159 = scmp.ne.s32.totalorder %s148, %s151
    %p160 = scmp.eq.s32.totalorder %s17, 1
    %p161 = por %p159, %p160
    %p162 = scmp.ne.s32.totalorder %s151, %s152
    %p163 = scmp.eq.s32.totalorder %s17, 0
    %p164 = por %p162, %p163
    %p165 = scmp.ne.s32.totalorder %s151, %s152
    %p166 = scmp.eq.s32.totalorder %s18, 1
    %p167 = por %p165, %p166
    %p169 = scmp.ne.s32.totalorder %s152, %s168
    %p170 = scmp.eq.s32.totalorder %s18, 0
    %p171 = por %p169, %p170
    %s172 = ssub.s32 %s19, %s31
    %s173 = ssub.s32 %s20, %s27
    %s174 = sor.u32 %s172, %s173
    %p175 = scmp.eq.s32.totalorder %s174, 0
    %s177 = sadd.s32 %s176, 1
    %s178 = scalar_select %p175, %s176, %s177
    %p181 = pneg %p175
    %p182 = scmp.eq.s32.totalorder %s12, 1
    %p183 = por %p181, %p182
    %p184 = scmp.ne.s32.totalorder %s176, %s179
    %p185 = scmp.eq.s32.totalorder %s12, 0
    %p186 = por %p184, %p185
    %p187 = scmp.ne.s32.totalorder %s176, %s179
    %p188 = scmp.eq.s32.totalorder %s17, 1
    %p189 = por %p187, %p188
    %p190 = scmp.ne.s32.totalorder %s179, %s180
    %p191 = scmp.eq.s32.totalorder %s17, 0
    %p192 = por %p190, %p191
    %p193 = scmp.ne.s32.totalorder %s179, %s180
    %p194 = scmp.eq.s32.totalorder %s18, 1
    %p195 = por %p193, %p194
    %p197 = scmp.ne.s32.totalorder %s180, %s196
    %p198 = scmp.eq.s32.totalorder %s18, 0
    %p199 = por %p197, %p198
    %p200 = scmp.le.s32.totalorder 1, %s12
    %p201 = scmp.lt.s32.totalorder %s12, 3
    %p202 = pnand %p200, %p201
    %p203 = pneg %p202
    // Predicated region
    $region9: #{smooth_ohem_loss.1} parent=5 // pred_check
      _
    $region10: #{smooth_ohem_loss.1} parent=5 // pred_check_branch
      %205 = sbr.rel (%p202) target = $region12
    $region11: #{smooth_ohem_loss.1} parent=5 // pred_region
      %s206 = ssub.s32 %s12, 1
    $region12: #{smooth_ohem_loss.1} parent=5 // pred_fallthru
      _
    %p207 = scmp.lt.s32.totalorder %s12, 2
    // Predicated region
    $region13: #{smooth_ohem_loss.1} parent=5 // pred_check
      %p208 = pneg %p207
    $region14: #{smooth_ohem_loss.1} parent=5 // pred_check_branch
      %210 = sbr.rel (%p208) target = $region16
    $region15: #{smooth_ohem_loss.1} parent=5 // pred_region
      // Predicated region
      $region17: #{smooth_ohem_loss.1} parent=15 // pred_check
        %p211 = pneg %p46
      $region18: #{smooth_ohem_loss.1} parent=15 // pred_check_branch
        %213 = sbr.rel (%p211) target = $region20
      $region19: #{smooth_ohem_loss.1} parent=15 // pred_region
        %p214 = scmp.lt.s32.totalorder %s19, 1
        %s215 = scalar_select %p214, %s19, 1
        %p216 = scmp.lt.s32.totalorder %s20, 0
        %s217 = scalar_select %p216, %s20, 0
        %s218 = sadd.s32 %s217, %s215
        %s219 = smul.addr %s218, 8
        %s220 = scalar_lea.vmem %s0, %s219
      $region20: #{smooth_ohem_loss.1} parent=15 // pred_fallthru
        _
      // Predicated region
      $region21: #{smooth_ohem_loss.1} parent=15 // pred_check
        %p221 = pneg %p74
      $region22: #{smooth_ohem_loss.1} parent=15 // pred_check_branch
        %223 = sbr.rel (%p221) target = $region24
      $region23: #{smooth_ohem_loss.1} parent=15 // pred_region
        %p224 = scmp.lt.s32.totalorder %s19, 1
        %s225 = scalar_select %p224, %s19, 1
        %p226 = scmp.lt.s32.totalorder %s20, 0
        %s227 = scalar_select %p226, %s20, 0
        %s228 = sadd.s32 %s227, %s225
        %s229 = smul.addr %s228, 8
        %s230 = scalar_lea.vmem %s1, %s229
      $region24: #{smooth_ohem_loss.1} parent=15 // pred_fallthru
        _
      // Predicated region
      $region25: #{smooth_ohem_loss.1} parent=15 // pred_check
        %p231 = pneg %p102
      $region26: #{smooth_ohem_loss.1} parent=15 // pred_check_branch
        %233 = sbr.rel (%p231) target = $region28
      $region27: #{smooth_ohem_loss.1} parent=15 // pred_region
        %p234 = scmp.lt.s32.totalorder %s19, 1
        %s235 = scalar_select %p234, %s19, 1
        %p236 = scmp.lt.s32.totalorder %s20, 0
        %s237 = scalar_select %p236, %s20, 0
        %s238 = sadd.s32 %s237, %s235
        %s239 = smul.addr %s238, 8
        %s240 = scalar_lea.vmem %s2, %s239
      $region28: #{smooth_ohem_loss.1} parent=15 // pred_fallthru
        _
      // Predicated region
      $region29: #{smooth_ohem_loss.1} parent=15 // pred_check
        %p241 = pneg %p130
      $region30: #{smooth_ohem_loss.1} parent=15 // pred_check_branch
        %243 = sbr.rel (%p241) target = $region32
      $region31: #{smooth_ohem_loss.1} parent=15 // pred_region
        %p244 = scmp.lt.s32.totalorder %s19, 1
        %s245 = scalar_select %p244, %s19, 1
        %p246 = scmp.lt.s32.totalorder %s20, 0
        %s247 = scalar_select %p246, %s20, 0
        %s248 = sadd.s32 %s247, %s245
        %s249 = smul.addr %s248, 8
        %s250 = scalar_lea.vmem %s3, %s249
      $region32: #{smooth_ohem_loss.1} parent=15 // pred_fallthru
        _
    $region16: #{smooth_ohem_loss.1} parent=5 // pred_fallthru
      _
    %p251 = scmp.le.s32.totalorder 1, %s12
    %p252 = scmp.lt.s32.totalorder %s12, 3
    %p253 = pnand %p251, %p252
    %p254 = pneg %p253
    // Predicated region
    $region33: #{smooth_ohem_loss.1} parent=5 // pred_check
      _
    $region34: #{smooth_ohem_loss.1} parent=5 // pred_check_branch
      %256 = sbr.rel (%p253) target = $region36
    $region35: #{smooth_ohem_loss.1} parent=5 // pred_region
      %s257 = ssub.s32 %s12, 1
      %p258 = scmp.lt.s32.totalorder %s21, 1
      %s259 = scalar_select %p258, %s21, 1
      %p260 = scmp.lt.s32.totalorder %s22, 0
      %s261 = scalar_select %p260, %s22, 0
      %s262 = sadd.s32 %s261, %s259
      %s263 = smul.addr %s262, 8
      %s264 = scalar_lea.vmem %s0, %s263
      %p265 = pneg %p52
      %p266 = pneg %p49
      %p267 = scmp.lt.s32.totalorder %s21, 1
      %s268 = scalar_select %p267, %s21, 1
      %p269 = scmp.lt.s32.totalorder %s22, 0
      %s270 = scalar_select %p269, %s22, 0
      %s271 = sadd.s32 %s270, %s268
      %s272 = smul.addr %s271, 8
      %s273 = scalar_lea.vmem %s1, %s272
      %p274 = pneg %p80
      %p275 = pneg %p77
      %p276 = scmp.lt.s32.totalorder %s21, 1
      %s277 = scalar_select %p276, %s21, 1
      %p278 = scmp.lt.s32.totalorder %s22, 0
      %s279 = scalar_select %p278, %s22, 0
      %s280 = sadd.s32 %s279, %s277
      %s281 = smul.addr %s280, 8
      %s282 = scalar_lea.vmem %s2, %s281
      %p283 = pneg %p108
      %p284 = pneg %p105
      %p285 = scmp.lt.s32.totalorder %s21, 1
      %s286 = scalar_select %p285, %s21, 1
      %p287 = scmp.lt.s32.totalorder %s22, 0
      %s288 = scalar_select %p287, %s22, 0
      %s289 = sadd.s32 %s288, %s286
      %s290 = smul.addr %s289, 8
      %s291 = scalar_lea.vmem %s3, %s290
      %p292 = pneg %p136
      %p293 = pneg %p133
      %p294 = pneg %p164
      %p295 = pneg %p161
      %p296 = scmp.lt.s32.totalorder %s21, 1
      %s297 = scalar_select %p296, %s21, 1
      %p298 = scmp.lt.s32.totalorder %s22, 0
      %s299 = scalar_select %p298, %s22, 0
      %s300 = sadd.s32 %s299, %s297
      %s301 = smul.addr %s300, 8
      %s302 = scalar_lea.vmem %s4, %s301
      %p303 = pneg %p192
      %p304 = pneg %p189
      %p305 = scmp.lt.s32.totalorder %s21, 1
      %s306 = scalar_select %p305, %s21, 1
      %p307 = scmp.lt.s32.totalorder %s22, 0
      %s308 = scalar_select %p307, %s22, 0
      %s309 = smul.addr %s308, 4
      %s310 = smul.addr %s306, 4
      %s311 = sadd.s32 %s309, %s310
      %s312 = smul.addr %s311, 8
      %s313 = scalar_lea.vmem %s5, %s312
      %p314 = scmp.lt.s32.totalorder %s21, 1
      %s315 = scalar_select %p314, %s21, 1
      %p316 = scmp.lt.s32.totalorder %s22, 0
      %s317 = scalar_select %p316, %s22, 0
      %s318 = sadd.s32 %s317, %s315
      %s319 = smul.addr %s318, 8
      %s320 = scalar_lea.vmem %s0, %s319
      %p321 = scmp.lt.s32.totalorder %s21, 1
      %s322 = scalar_select %p321, %s21, 1
      %p323 = scmp.lt.s32.totalorder %s22, 0
      %s324 = scalar_select %p323, %s22, 0
      %s325 = sadd.s32 %s324, %s322
      %s326 = smul.addr %s325, 8
      %s327 = scalar_lea.vmem %s1, %s326
      %p328 = scmp.lt.s32.totalorder %s21, 1
      %s329 = scalar_select %p328, %s21, 1
      %p330 = scmp.lt.s32.totalorder %s22, 0
      %s331 = scalar_select %p330, %s22, 0
      %s332 = sadd.s32 %s331, %s329
      %s333 = smul.addr %s332, 8
      %s334 = scalar_lea.vmem %s2, %s333
      %p335 = scmp.lt.s32.totalorder %s21, 1
      %s336 = scalar_select %p335, %s21, 1
      %p337 = scmp.lt.s32.totalorder %s22, 0
      %s338 = scalar_select %p337, %s22, 0
      %s339 = sadd.s32 %s338, %s336
      %s340 = smul.addr %s339, 8
      %s341 = scalar_lea.vmem %s3, %s340
      %p342 = scmp.lt.s32.totalorder %s21, 1
      %s343 = scalar_select %p342, %s21, 1
      %p344 = scmp.lt.s32.totalorder %s22, 0
      %s345 = scalar_select %p344, %s22, 0
      %s346 = sadd.s32 %s345, %s343
      %s347 = smul.addr %s346, 8
      %s348 = scalar_lea.vmem %s4, %s347
      %p349 = scmp.lt.s32.totalorder %s21, 1
      %s350 = scalar_select %p349, %s21, 1
      %p351 = scmp.lt.s32.totalorder %s22, 0
      %s352 = scalar_select %p351, %s22, 0
      %s353 = smul.addr %s352, 4
      %s354 = smul.addr %s350, 4
      %s355 = sadd.s32 %s353, %s354
      %s356 = smul.addr %s355, 8
      %s357 = scalar_lea.vmem %s5, %s356
      %v358 = vld [vmem:[%s320] sm:$0xff]
      %v359 = vld [vmem:[%s327] sm:$0xff]
      %v360 = vld [vmem:[%s334] sm:$0xff]
      %v361 = vld [vmem:[%s341] sm:$0xff]
      %v362 = vsub.f32 %v358, %v359
      %v363 = vand.u32 2147483647, %v362
      %vm364 = vcmp.lt.f32.partialorder %v363, 1.0
      %v365 = vmul.f32 %v362, 0.5
      %v366 = vmul.f32 %v365, %v362
      %v367 = vsub.f32 %v363, 0.5
      %v368 = vsel %vm364, %v366, %v367
      %v369 = vmul.f32 %v368, %v361
      %vm370 = vcmp.gt.f32.partialorder %v359, 0.0
      %v371 = vsel %vm370, 1, 0
      %v372 = vcvt.s32.f32 %v371
      %vm373 = vcmp.eq.f32.partialorder %v359, 0.0
      %vm374 = vcmp.ne.f32.partialorder %v360, 0.0
      %vm375 = vmand %vm373, %vm374
      %v376 = vsel %vm375, %v369, -3.4028235e+38
      %377 = vst [vmem:[%s348] sm:$0xff] %v376
      %v378 = vmul.f32 %v369, %v372
      %v379 = vadd.f32 %v378, 0.0
      %v380 = vadd.f32 %v379, 0.0
      %v381 = vadd.f32 %v372, 0.0
      %v382 = vadd.f32 %v381, 0.0
      %v383 = vadd.f32 %v360, 0.0
      %v384 = vadd.f32 %v383, 0.0
      %v385 = vsel %vm375, 1, 0
      %v386 = vcvt.s32.f32 %v385
      %v387 = vadd.f32 %v386, 0.0
      %v388 = vadd.f32 %v387, 0.0
      %389 = vst [vmem:[%s357] sm:$0xff] %v380
      %390 = vst [vmem:[%s357 + $0x8] sm:$0xff] %v382
      %391 = vst [vmem:[%s357 + $0x10] sm:$0xff] %v384
      %392 = vst [vmem:[%s357 + $0x18] sm:$0xff] %v388
      %p393 = scmp.lt.s32.totalorder %s21, 1
      %s394 = scalar_select %p393, %s21, 1
      %p395 = scmp.lt.s32.totalorder %s22, 0
      %s396 = scalar_select %p395, %s22, 0
      %s397 = sadd.s32 %s396, %s394
      %s398 = smul.addr %s397, 8
      %s399 = scalar_lea.vmem %s4, %s398
      %p400 = scmp.lt.s32.totalorder %s21, 1
      %s401 = scalar_select %p400, %s21, 1
      %p402 = scmp.lt.s32.totalorder %s22, 0
      %s403 = scalar_select %p402, %s22, 0
      %s404 = smul.addr %s403, 4
      %s405 = smul.addr %s401, 4
      %s406 = sadd.s32 %s404, %s405
      %s407 = smul.addr %s406, 8
      %s408 = scalar_lea.vmem %s5, %s407
      // Predicated region
      $region37: #{smooth_ohem_loss.1} parent=35 // pred_check
        %p409 = pneg %p161
      $region38: #{smooth_ohem_loss.1} parent=35 // pred_check_branch
        %411 = sbr.rel (%p409) target = $region40
      $region39: #{smooth_ohem_loss.1} parent=35 // pred_region
        _
      $region40: #{smooth_ohem_loss.1} parent=35 // pred_fallthru
        _
      // Predicated region
      $region41: #{smooth_ohem_loss.1} parent=35 // pred_check
        %p412 = pneg %p189
      $region42: #{smooth_ohem_loss.1} parent=35 // pred_check_branch
        %414 = sbr.rel (%p412) target = $region44
      $region43: #{smooth_ohem_loss.1} parent=35 // pred_region
        _
      $region44: #{smooth_ohem_loss.1} parent=35 // pred_fallthru
        _
    $region36: #{smooth_ohem_loss.1} parent=5 // pred_fallthru
      _
    %p415 = scmp.le.s32.totalorder 2, %s12
    // Predicated region
    $region45: #{smooth_ohem_loss.1} parent=5 // pred_check
      %p416 = pneg %p415
    $region46: #{smooth_ohem_loss.1} parent=5 // pred_check_branch
      %418 = sbr.rel (%p416) target = $region48
    $region47: #{smooth_ohem_loss.1} parent=5 // pred_region
      %s419 = ssub.s32 %s12, 2
      // Predicated region
      $region49: #{smooth_ohem_loss.1} parent=47 // pred_check
        %p420 = pneg %p167
      $region50: #{smooth_ohem_loss.1} parent=47 // pred_check_branch
        %422 = sbr.rel (%p420) target = $region52
      $region51: #{smooth_ohem_loss.1} parent=47 // pred_region
        %p423 = scmp.lt.s32.totalorder %s23, 1
        %s424 = scalar_select %p423, %s23, 1
        %p425 = scmp.lt.s32.totalorder %s24, 0
        %s426 = scalar_select %p425, %s24, 0
        %s427 = sadd.s32 %s426, %s424
        %s428 = smul.addr %s427, 8
        %s429 = scalar_lea.vmem %s4, %s428
      $region52: #{smooth_ohem_loss.1} parent=47 // pred_fallthru
        _
      // Predicated region
      $region53: #{smooth_ohem_loss.1} parent=47 // pred_check
        %p430 = pneg %p195
      $region54: #{smooth_ohem_loss.1} parent=47 // pred_check_branch
        %432 = sbr.rel (%p430) target = $region56
      $region55: #{smooth_ohem_loss.1} parent=47 // pred_region
        %p433 = scmp.lt.s32.totalorder %s23, 1
        %s434 = scalar_select %p433, %s23, 1
        %p435 = scmp.lt.s32.totalorder %s24, 0
        %s436 = scalar_select %p435, %s24, 0
        %s437 = smul.addr %s436, 4
        %s438 = smul.addr %s434, 4
        %s439 = sadd.s32 %s437, %s438
        %s440 = smul.addr %s439, 8
        %s441 = scalar_lea.vmem %s5, %s440
      $region56: #{smooth_ohem_loss.1} parent=47 // pred_fallthru
        _
    $region48: #{smooth_ohem_loss.1} parent=5 // pred_fallthru
      _
  $region6: #{smooth_ohem_loss.1} parent=0 // loop_footer
    %s16 = sadd.s32 1, %s12
  $region7: #{smooth_ohem_loss.1} parent=0 // loop_footer_branch
    %11 = sbr.rel target = $region3
  $region8: #{smooth_ohem_loss.1} parent=0 // loop_exit
    _

</llo_original>
